<compile_context>
chip_gen: v7x
topology: tpu7x:2x2x1
jax: 0.10.0
libtpu: 0.0.40
codegen_flags: <defaults>
</compile_context>

<pallas_src>
import numpy as np
import jax
import jax.numpy as jnp
from jax import lax
from jax.experimental import pallas as pl
from jax.experimental.pallas import tpu as pltpu

K3 = 3     # conv1 / conv2 kernel size
K10 = 10   # conv3 kernel size


def scnn_kernel(x_ref, m1_ref, m2_ref, m3_ref, b_ref,
                spk3_ref, cur3_ref, s1_ref, s2_ref):
    # x_ref:    (HW, NB)     VMEM  - NB flattened images, batch on lanes
    # m1_ref:   (HW, HW)     VMEM  - conv1 band matrix (pad=1 folded in)
    # m2_ref:   (HW, HW)     VMEM  - conv2 band matrix
    # m3_ref:   (OHWp, HW)   VMEM  - conv3 im2col matrix (zero-padded rows)
    # b_ref:    (3,)         SMEM  - [bias1, bias2, bias3]
    # spk3_ref/cur3_ref: (OHWp, NB) VMEM lane-dense output blocks
    # s1_ref/s2_ref: (HW, NB) VMEM scratch - spk1 / spk2 staging

    # conv1 (3x3, pad=1) + relu  — one MXU matmul
    c1 = jnp.dot(m1_ref[...], x_ref[...], preferred_element_type=jnp.float32)
    s1_ref[...] = jnp.maximum(c1 + b_ref[0], 0.0)

    # conv2 (3x3, pad=1) + relu
    c2 = jnp.dot(m2_ref[...], s1_ref[...], preferred_element_type=jnp.float32)
    s2_ref[...] = jnp.maximum(c2 + b_ref[1], 0.0)

    # conv3 (10x10, pad=0); cur3 and spk3 = relu(cur3)
    c3 = jnp.dot(m3_ref[...], s2_ref[...], preferred_element_type=jnp.float32)
    cur3 = c3 + b_ref[2]
    cur3_ref[...] = cur3
    spk3_ref[...] = jnp.maximum(cur3, 0.0)


def _conv_band_matrix(w, H, W, pad):
    """Dense (OH*OW, H*W) matrix M s.t. y_flat = M @ x_flat equals the
    cross-correlation of x (H, W) with kernel w, zero-padded by `pad`."""
    kh, kw = w.shape
    OH = H + 2 * pad - kh + 1
    OW = W + 2 * pad - kw + 1
    rows, cols, tap_idx = [], [], []
    for oi in range(OH):
        for oj in range(OW):
            r = oi * OW + oj
            for di in range(kh):
                for dj in range(kw):
                    si, sj = oi + di - pad, oj + dj - pad
                    if 0 <= si < H and 0 <= sj < W:
                        rows.append(r)
                        cols.append(si * W + sj)
                        tap_idx.append(di * kw + dj)
    rows = np.asarray(rows, np.int32)
    cols = np.asarray(cols, np.int32)
    tap_idx = np.asarray(tap_idx, np.int32)
    vals = jnp.asarray(w, jnp.float32).reshape(-1)[tap_idx]
    m = jnp.zeros((OH * OW, H * W), jnp.float32)
    return m.at[(rows, cols)].set(vals)


def scnn_forward(x_nchw, w1, b1, w2, b2, w3, b3, nb=256):
    """x_nchw: (N, 1, H, W) float32 -> (spk3, cur3), each (N, 1, OH, OW).

    nb = images per grid step (lane-block size, multiple of 128).  On v7x
    prefer npad // nb >= 2 so both TensorCores get work on the "parallel"
    grid axis; for tiny batches the grid collapses to one step regardless.
    """
    N, C, H, W = x_nchw.shape
    assert C == 1
    OH, OW = H - (K10 - 1), W - (K10 - 1)
    HW = H * W
    OHW = OH * OW
    OHWp = ((OHW + 7) // 8) * 8           # sublane-align conv3 output rows

    # Cap nb for small batches so we don't pad (and compute) useless lanes.
    nb = ((max(128, nb) + 127) // 128) * 128
    nb = min(nb, ((N + 127) // 128) * 128)
    npad = ((N + nb - 1) // nb) * nb

    # (N, 1, H, W) -> (HW, N), batch on lanes, then pad lanes to npad.
    x = jnp.transpose(x_nchw.reshape(N, HW), (1, 0)).astype(jnp.float32)
    if npad != N:
        x = jnp.pad(x, ((0, 0), (0, npad - N)))

    # Precomputed conv matrices (DMA'd once; constant index_map below).
    m1 = _conv_band_matrix(w1, H, W, pad=1)            # (HW, HW)
    m2 = _conv_band_matrix(w2, H, W, pad=1)            # (HW, HW)
    m3 = _conv_band_matrix(w3, H, W, pad=0)            # (OHW, HW)
    if OHWp != OHW:
        m3 = jnp.pad(m3, ((0, OHWp - OHW), (0, 0)))    # zero rows -> bias-only

    bias = jnp.stack([jnp.asarray(b1), jnp.asarray(b2),
                      jnp.asarray(b3)]).astype(jnp.float32)          # (3,)

    smem_spec = pl.BlockSpec(memory_space=pltpu.MemorySpace.SMEM)

    spk3, cur3 = pl.pallas_call(
        scnn_kernel,
        out_shape=(jax.ShapeDtypeStruct((OHWp, npad), jnp.float32),
                   jax.ShapeDtypeStruct((OHWp, npad), jnp.float32)),
        grid_spec=pltpu.PrefetchScalarGridSpec(
            num_scalar_prefetch=0,
            grid=(npad // nb,),
            in_specs=[
                pl.BlockSpec((HW, nb), lambda b: (0, b)),      # x slab
                pl.BlockSpec((HW, HW), lambda b: (0, 0)),      # M1 (constant)
                pl.BlockSpec((HW, HW), lambda b: (0, 0)),      # M2 (constant)
                pl.BlockSpec((OHWp, HW), lambda b: (0, 0)),    # M3 (constant)
                smem_spec,                                     # biases
            ],
            out_specs=[
                pl.BlockSpec((OHWp, nb), lambda b: (0, b)),
                pl.BlockSpec((OHWp, nb), lambda b: (0, b)),
            ],
            scratch_shapes=[pltpu.VMEM((HW, nb), jnp.float32),   # spk1
                            pltpu.VMEM((HW, nb), jnp.float32)],  # spk2
        ),
        compiler_params=pltpu.CompilerParams(
            dimension_semantics=("parallel",)),
    )(x, m1, m2, m3, bias)

    # Slice away padded rows/lanes BEFORE transposing (less HBM traffic),
    # then back to NCHW.
    spk3 = jnp.transpose(spk3[:OHW, :N], (1, 0)).reshape(N, 1, OH, OW)
    cur3 = jnp.transpose(cur3[:OHW, :N], (1, 0)).reshape(N, 1, OH, OW)
    return spk3, cur3


# ---- pure-JAX reference (for a correctness check) -------------------------
def _conv2d_ref(x, w, b, pad):
    y = lax.conv_general_dilated(
        x, w[None, None].astype(jnp.float32),
        window_strides=(1, 1), padding=[(pad, pad), (pad, pad)],
        dimension_numbers=("NCHW", "OIHW", "NCHW"))
    return y + b


def scnn_ref(x, w1, b1, w2, b2, w3, b3):
    spk1 = jax.nn.relu(_conv2d_ref(x, w1, b1, 1))
    spk2 = jax.nn.relu(_conv2d_ref(spk1, w2, b2, 1))
    cur3 = _conv2d_ref(spk2, w3, b3, 0)
    return jax.nn.relu(cur3), cur3


if __name__ == "__main__":
    key = jax.random.PRNGKey(0)
    kx, k1, k2, k3, k4, k5, k6 = jax.random.split(key, 7)

    N, H, W = 2, 16, 16
    x = jax.random.normal(kx, (N, 1, H, W), jnp.float32)

    # Deterministic parameter init (PyTorch Conv2d-style uniform bounds).
    bnd3 = 1.0 / (K3 * K3) ** 0.5     # fan_in = 9
    bnd10 = 1.0 / (K10 * K10) ** 0.5  # fan_in = 100
    w1 = jax.random.uniform(k1, (K3, K3), jnp.float32, -bnd3, bnd3)
    b1 = jax.random.uniform(k2, (), jnp.float32, -bnd3, bnd3)
    w2 = jax.random.uniform(k3, (K3, K3), jnp.float32, -bnd3, bnd3)
    b2 = jax.random.uniform(k4, (), jnp.float32, -bnd3, bnd3)
    w3 = jax.random.uniform(k5, (K10, K10), jnp.float32, -bnd10, bnd10)
    b3 = jax.random.uniform(k6, (), jnp.float32, -bnd10, bnd10)

    spk3, cur3 = scnn_forward(x, w1, b1, w2, b2, w3, b3)
    jax.block_until_ready((spk3, cur3))

    spk3_r, cur3_r = scnn_ref(x, w1, b1, w2, b2, w3, b3)
    assert spk3.shape == (N, 1, H - 9, W - 9) and cur3.shape == (N, 1, H - 9, W - 9)
    assert jnp.allclose(spk3, spk3_r, atol=1e-4, rtol=1e-4)
    assert jnp.allclose(cur3, cur3_r, atol=1e-4, rtol=1e-4)

    print("KERNEL_OK")
</pallas_src>

<mosaic_0001>
module attributes {stable_mosaic.version = 11 : i64} {
  func.func @scnn_kernel(%arg0: i32, %arg1: memref<256x128xf32, #tpu.memory_space<vmem>>, %arg2: memref<256x256xf32, #tpu.memory_space<vmem>>, %arg3: memref<256x256xf32, #tpu.memory_space<vmem>>, %arg4: memref<56x256xf32, #tpu.memory_space<vmem>>, %arg5: memref<3xf32, #tpu.memory_space<smem>>, %arg6: memref<56x128xf32, #tpu.memory_space<vmem>>, %arg7: memref<56x128xf32, #tpu.memory_space<vmem>>, %arg8: memref<256x128xf32, #tpu.memory_space<vmem>>, %arg9: memref<256x128xf32, #tpu.memory_space<vmem>>) attributes {dimension_semantics = [#tpu.dimension_semantics<parallel>], iteration_bounds = array<i64: 1>, scalar_prefetch = 0 : i64, scratch_operands = 2 : i64, tpu.core_type = #tpu.core_type<tc>, window_params = [{transform_indices = @transform_0, window_bounds = array<i64: 256, 128>}, {pipeline_mode = #tpu.pipeline_mode<synchronous>, transform_indices = @transform_1, window_bounds = array<i64: 256, 256>}, {pipeline_mode = #tpu.pipeline_mode<synchronous>, transform_indices = @transform_2, window_bounds = array<i64: 256, 256>}, {pipeline_mode = #tpu.pipeline_mode<synchronous>, transform_indices = @transform_3, window_bounds = array<i64: 56, 256>}, {transform_indices = @transform_4, window_bounds = array<i64: 3>}, {transform_indices = @transform_5, window_bounds = array<i64: 56, 128>}, {transform_indices = @transform_6, window_bounds = array<i64: 56, 128>}]} {
    %c0 = arith.constant 0 : index
    %c0_0 = arith.constant 0 : index
    %0 = vector.load %arg2[%c0, %c0_0] : memref<256x256xf32, #tpu.memory_space<vmem>>, vector<256x256xf32>
    %c0_1 = arith.constant 0 : index
    %c0_2 = arith.constant 0 : index
    %1 = vector.load %arg1[%c0_1, %c0_2] : memref<256x128xf32, #tpu.memory_space<vmem>>, vector<256x128xf32>
    %cst = arith.constant dense<0.000000e+00> : vector<256x128xf32>
    %2 = tpu.matmul %0, %1, %cst {dimension_numbers = #tpu.dot_dimension_numbers<[1], [0], [0], [1], [0, 0, 1, 1], [], []>} : vector<256x256xf32>, vector<256x128xf32>, vector<256x128xf32> -> vector<256x128xf32>
    %c0_3 = arith.constant 0 : index
    %3 = memref.load %arg5[%c0_3] : memref<3xf32, #tpu.memory_space<smem>>
    %4 = vector.broadcast %3 : f32 to vector<256x128xf32>
    %5 = arith.addf %2, %4 : vector<256x128xf32>
    %cst_4 = arith.constant 0.000000e+00 : f32
    %6 = vector.broadcast %cst_4 : f32 to vector<256x128xf32>
    %7 = arith.maximumf %5, %6 : vector<256x128xf32>
    %c0_5 = arith.constant 0 : index
    %c0_6 = arith.constant 0 : index
    %8 = vector.load %arg8[%c0_5, %c0_6] : memref<256x128xf32, #tpu.memory_space<vmem>>, vector<256x128xf32>
    tpu.vector_store %arg8[%c0_5, %c0_6], %7 {strides = array<i32>} : memref<256x128xf32, #tpu.memory_space<vmem>>, vector<256x128xf32>,
    %c0_7 = arith.constant 0 : index
    %c0_8 = arith.constant 0 : index
    %9 = vector.load %arg3[%c0_7, %c0_8] : memref<256x256xf32, #tpu.memory_space<vmem>>, vector<256x256xf32>
    %c0_9 = arith.constant 0 : index
    %c0_10 = arith.constant 0 : index
    %10 = vector.load %arg8[%c0_9, %c0_10] : memref<256x128xf32, #tpu.memory_space<vmem>>, vector<256x128xf32>
    %cst_11 = arith.constant dense<0.000000e+00> : vector<256x128xf32>
    %11 = tpu.matmul %9, %10, %cst_11 {dimension_numbers = #tpu.dot_dimension_numbers<[1], [0], [0], [1], [0, 0, 1, 1], [], []>} : vector<256x256xf32>, vector<256x128xf32>, vector<256x128xf32> -> vector<256x128xf32>
    %c1 = arith.constant 1 : index
    %12 = memref.load %arg5[%c1] : memref<3xf32, #tpu.memory_space<smem>>
    %13 = vector.broadcast %12 : f32 to vector<256x128xf32>
    %14 = arith.addf %11, %13 : vector<256x128xf32>
    %cst_12 = arith.constant 0.000000e+00 : f32
    %15 = vector.broadcast %cst_12 : f32 to vector<256x128xf32>
    %16 = arith.maximumf %14, %15 : vector<256x128xf32>
    %c0_13 = arith.constant 0 : index
    %c0_14 = arith.constant 0 : index
    %17 = vector.load %arg9[%c0_13, %c0_14] : memref<256x128xf32, #tpu.memory_space<vmem>>, vector<256x128xf32>
    tpu.vector_store %arg9[%c0_13, %c0_14], %16 {strides = array<i32>} : memref<256x128xf32, #tpu.memory_space<vmem>>, vector<256x128xf32>,
    %c0_15 = arith.constant 0 : index
    %c0_16 = arith.constant 0 : index
    %18 = vector.load %arg4[%c0_15, %c0_16] : memref<56x256xf32, #tpu.memory_space<vmem>>, vector<56x256xf32>
    %c0_17 = arith.constant 0 : index
    %c0_18 = arith.constant 0 : index
    %19 = vector.load %arg9[%c0_17, %c0_18] : memref<256x128xf32, #tpu.memory_space<vmem>>, vector<256x128xf32>
    %cst_19 = arith.constant dense<0.000000e+00> : vector<56x128xf32>
    %20 = tpu.matmul %18, %19, %cst_19 {dimension_numbers = #tpu.dot_dimension_numbers<[1], [0], [0], [1], [0, 0, 1, 1], [], []>} : vector<56x256xf32>, vector<256x128xf32>, vector<56x128xf32> -> vector<56x128xf32>
    %c2 = arith.constant 2 : index
    %21 = memref.load %arg5[%c2] : memref<3xf32, #tpu.memory_space<smem>>
    %22 = vector.broadcast %21 : f32 to vector<56x128xf32>
    %23 = arith.addf %20, %22 : vector<56x128xf32>
    %c0_20 = arith.constant 0 : index
    %c0_21 = arith.constant 0 : index
    %24 = vector.load %arg7[%c0_20, %c0_21] : memref<56x128xf32, #tpu.memory_space<vmem>>, vector<56x128xf32>
    tpu.vector_store %arg7[%c0_20, %c0_21], %23 {strides = array<i32>} : memref<56x128xf32, #tpu.memory_space<vmem>>, vector<56x128xf32>,
    %cst_22 = arith.constant 0.000000e+00 : f32
    %25 = vector.broadcast %cst_22 : f32 to vector<56x128xf32>
    %26 = arith.maximumf %23, %25 : vector<56x128xf32>
    %c0_23 = arith.constant 0 : index
    %c0_24 = arith.constant 0 : index
    %27 = vector.load %arg6[%c0_23, %c0_24] : memref<56x128xf32, #tpu.memory_space<vmem>>, vector<56x128xf32>
    tpu.vector_store %arg6[%c0_23, %c0_24], %26 {strides = array<i32>} : memref<56x128xf32, #tpu.memory_space<vmem>>, vector<56x128xf32>,
    return
  }
  func.func @transform_0(%arg0: i32) -> (i32, i32) {
    %c0_i32 = arith.constant 0 : i32
    %c0_i32_0 = arith.constant 0 : i32
    return %c0_i32, %arg0 : i32, i32
  }
  func.func @transform_1(%arg0: i32) -> (i32, i32) {
    %c0_i32 = arith.constant 0 : i32
    %c0_i32_0 = arith.constant 0 : i32
    %c0_i32_1 = arith.constant 0 : i32
    return %c0_i32, %c0_i32_0 : i32, i32
  }
  func.func @transform_2(%arg0: i32) -> (i32, i32) {
    %c0_i32 = arith.constant 0 : i32
    %c0_i32_0 = arith.constant 0 : i32
    %c0_i32_1 = arith.constant 0 : i32
    return %c0_i32, %c0_i32_0 : i32, i32
  }
  func.func @transform_3(%arg0: i32) -> (i32, i32) {
    %c0_i32 = arith.constant 0 : i32
    %c0_i32_0 = arith.constant 0 : i32
    %c0_i32_1 = arith.constant 0 : i32
    return %c0_i32, %c0_i32_0 : i32, i32
  }
  func.func @transform_4(%arg0: i32) -> i32 {
    %c0_i32 = arith.constant 0 : i32
    %c0_i32_0 = arith.constant 0 : i32
    return %c0_i32 : i32
  }
  func.func @transform_5(%arg0: i32) -> (i32, i32) {
    %c0_i32 = arith.constant 0 : i32
    %c0_i32_0 = arith.constant 0 : i32
    return %c0_i32, %arg0 : i32, i32
  }
  func.func @transform_6(%arg0: i32) -> (i32, i32) {
    %c0_i32 = arith.constant 0 : i32
    %c0_i32_0 = arith.constant 0 : i32
    return %c0_i32, %arg0 : i32, i32
  }
}

</mosaic_0001>

<llo_original>
// kernel: tpu_custom_call.1
$region0: #{tpu_custom_call.1}
  #allocation0 [shape = 'u32[]', space=smem, size = 0x4, offset = 0x4, fixed_abs, tag = 'smem constant byte address 0x4 - core index']
  #allocation1 [shape = 'u32[144,128]{1,0:T(1,128)}', space=vmem, size = 0x12000, scoped, tag = 'internal scratch']
  #allocation2 [shape = 'f32[256,128]{1,0:T(8,128)}', space=vmem, size = 0x20000, scoped, tag = 'scratch operand']
  #allocation3 [shape = 'f32[256,128]{1,0:T(8,128)}', space=vmem, size = 0x20000, scoped, tag = 'scratch operand']
  %s0 = inlined_call_operand.hbm [shape: f32[256,128], index: 0, kind: input, shape index: {}]
  %s1 = inlined_call_operand.hbm [shape: f32[256,256], index: 1, kind: input, shape index: {}]
  %s2 = inlined_call_operand.hbm [shape: f32[256,256], index: 2, kind: input, shape index: {}]
  %s3 = inlined_call_operand.hbm [shape: f32[56,256], index: 3, kind: input, shape index: {}]
  %s4 = inlined_call_operand.vmem [shape: f32[3], index: 4, kind: input, shape index: {}]
  %s5 = inlined_call_operand.hbm [shape: f32[56,128], index: 5, kind: output, shape index: {0}]
  %s6 = inlined_call_operand.hbm [shape: f32[56,128], index: 6, kind: output, shape index: {1}]
  %7 = xla_tuple %s5, %s6
  %s8 = sld [smem:[#allocation0]]
  $region58: #{tpu_custom_call.1} parent=0
    _
  %s10 = ssub.s32 1, %s8
  %s11 = scalar_select 0, %s10, %s8
  $region1: #{tpu_custom_call.1} parent=0
    #allocation4 [shape = 'u8[131072]{0}', space=vmem, size = 0x20000, scoped, tag = 'input window, operand 0, single buffered']
    #allocation5 [shape = 's32[1]{0}', space=sflag, size = 0x4, scoped, tag = 'scoped memory for tpu_custom_call.1']
    #allocation6 [shape = 's32[1]{0}', space=sflag, size = 0x4, scoped, tag = 'scoped memory for tpu_custom_call.1']
    #allocation7 [shape = 's32[1]{0}', space=sflag, size = 0x4, scoped, tag = 'scoped memory for tpu_custom_call.1']
    #allocation8 [shape = 'u8[262144]{0}', space=vmem, size = 0x40000, scoped, tag = 'input window, operand 1, single buffered']
    #allocation9 [shape = 's32[1]{0}', space=sflag, size = 0x4, scoped, tag = 'scoped memory for tpu_custom_call.1']
    #allocation10 [shape = 'u8[262144]{0}', space=vmem, size = 0x40000, scoped, tag = 'input window, operand 2, single buffered']
    #allocation11 [shape = 'u8[57344]{0}', space=vmem, size = 0xe000, scoped, tag = 'input window, operand 3, single buffered']
    #allocation12 [shape = 's32[1]{0}', space=sflag, size = 0x4, scoped, tag = 'scoped memory for tpu_custom_call.1']
    #allocation13 [shape = 'u8[512]{0}', space=smem, size = 0x200, scoped, tag = 'input window, operand 4, single buffered']
    #allocation14 [shape = 'u8[28672]{0}', space=vmem, size = 0x7000, scoped, tag = 'output window, operand 0, single buffered']
    #allocation15 [shape = 'u8[28672]{0}', space=vmem, size = 0x7000, scoped, tag = 'output window, operand 1, single buffered']
    #allocation16 [shape = 's32[1]{0}', space=sflag, size = 0x4, scoped, tag = 'scoped memory for tpu_custom_call.1']
    %12 = vsyncpa [#allocation5], 0
    %13 = vsyncpa [#allocation9], 0
    %14 = vsyncpa [#allocation12], 0
    %15 = vsyncpa [#allocation7], 0
    %16 = vsyncpa [#allocation6], 0
    %17 = vsyncpa [#allocation16], 0
    // Predicated region
    $region2: #{tpu_custom_call.1} parent=1 // pred_check
      _
    $region3: #{tpu_custom_call.1} parent=1 // pred_check_branch
      %19 = sbr.rel (0) target = $region5
    $region4: #{tpu_custom_call.1} parent=1 // pred_region
      %s21 = ssub.s32 4096, 4096
      %22 = vsyncadd [#allocation5], %s21
      %s23 = sshll.u32 [#allocation4], 4
      %s24 = int_to_ptr.vmem [resolvable:$true] %s23
      %29 = dma.hbm_to_vmem [thread:$0]  %s0, 4096, %s24, [#allocation5], 128, 128, 8
    $region5: #{tpu_custom_call.1} parent=1 // pred_fallthru
      _
    // Predicated region
    $region6: #{tpu_custom_call.1} parent=1 // pred_check
      _
    $region7: #{tpu_custom_call.1} parent=1 // pred_check_branch
      %31 = sbr.rel (0) target = $region9
    $region8: #{tpu_custom_call.1} parent=1 // pred_region
      %s33 = ssub.s32 8192, 8192
      %34 = vsyncadd [#allocation9], %s33
      %s35 = sshll.u32 [#allocation8], 4
      %s36 = int_to_ptr.vmem [resolvable:$true] %s35
      %41 = dma.hbm_to_vmem [thread:$0]  %s1, 8192, %s36, [#allocation9], 256, 256, 16
    $region9: #{tpu_custom_call.1} parent=1 // pred_fallthru
      _
    // Predicated region
    $region10: #{tpu_custom_call.1} parent=1 // pred_check
      _
    $region11: #{tpu_custom_call.1} parent=1 // pred_check_branch
      %43 = sbr.rel (0) target = $region13
    $region12: #{tpu_custom_call.1} parent=1 // pred_region
      %s45 = ssub.s32 8192, 8192
      %46 = vsyncadd [#allocation9], %s45
      %s47 = sshll.u32 [#allocation10], 4
      %s48 = int_to_ptr.vmem [resolvable:$true] %s47
      %53 = dma.hbm_to_vmem [thread:$0]  %s2, 8192, %s48, [#allocation9], 256, 256, 16
    $region13: #{tpu_custom_call.1} parent=1 // pred_fallthru
      _
    // Predicated region
    $region14: #{tpu_custom_call.1} parent=1 // pred_check
      _
    $region15: #{tpu_custom_call.1} parent=1 // pred_check_branch
      %55 = sbr.rel (0) target = $region17
    $region16: #{tpu_custom_call.1} parent=1 // pred_region
      %s57 = ssub.s32 1792, 1792
      %58 = vsyncadd [#allocation12], %s57
      %s59 = sshll.u32 [#allocation11], 4
      %s60 = int_to_ptr.vmem [resolvable:$true] %s59
      %65 = dma.hbm_to_vmem [thread:$0]  %s3, 1792, %s60, [#allocation12], 256, 256, 16
    $region17: #{tpu_custom_call.1} parent=1 // pred_fallthru
      _
    // Predicated region
    $region18: #{tpu_custom_call.1} parent=1 // pred_check
      _
    $region19: #{tpu_custom_call.1} parent=1 // pred_check_branch
      %67 = sbr.rel (0) target = $region21
    $region20: #{tpu_custom_call.1} parent=1 // pred_region
      %s69 = ssub.s32 16, 16
      %70 = vsyncadd [#allocation7], %s69
      %s72 = sshll.u32 %s4, 4
      %s73 = int_to_ptr.vmem [resolvable:$true] %s72
      %75 = dma.vmem_to_smem %s73, 16, [#allocation13], [#allocation7]
    $region21: #{tpu_custom_call.1} parent=1 // pred_fallthru
      _
    // Predicated region
    $region22: #{tpu_custom_call.1} parent=1 // pred_check
      _
    $region23: #{tpu_custom_call.1} parent=1 // pred_check_branch
      %77 = sbr.rel (0) target = $region25
    $region24: #{tpu_custom_call.1} parent=1 // pred_region
      %78 = dma.done [#allocation5], 4096
    $region25: #{tpu_custom_call.1} parent=1 // pred_fallthru
      _
    // Predicated region
    $region26: #{tpu_custom_call.1} parent=1 // pred_check
      _
    $region27: #{tpu_custom_call.1} parent=1 // pred_check_branch
      %80 = sbr.rel (0) target = $region29
    $region28: #{tpu_custom_call.1} parent=1 // pred_region
      %81 = dma.done [#allocation9], 8192
    $region29: #{tpu_custom_call.1} parent=1 // pred_fallthru
      _
    // Predicated region
    $region30: #{tpu_custom_call.1} parent=1 // pred_check
      _
    $region31: #{tpu_custom_call.1} parent=1 // pred_check_branch
      %83 = sbr.rel (0) target = $region33
    $region32: #{tpu_custom_call.1} parent=1 // pred_region
      %84 = dma.done [#allocation9], 8192
    $region33: #{tpu_custom_call.1} parent=1 // pred_fallthru
      _
    // Predicated region
    $region34: #{tpu_custom_call.1} parent=1 // pred_check
      _
    $region35: #{tpu_custom_call.1} parent=1 // pred_check_branch
      %86 = sbr.rel (0) target = $region37
    $region36: #{tpu_custom_call.1} parent=1 // pred_region
      %87 = dma.done [#allocation12], 1792
    $region37: #{tpu_custom_call.1} parent=1 // pred_fallthru
      _
    // Predicated region
    $region38: #{tpu_custom_call.1} parent=1 // pred_check
      _
    $region39: #{tpu_custom_call.1} parent=1 // pred_check_branch
      %89 = sbr.rel (0) target = $region41
    $region40: #{tpu_custom_call.1} parent=1 // pred_region
      %90 = dma.done [#allocation7], 16
    $region41: #{tpu_custom_call.1} parent=1 // pred_fallthru
      _
    %91 = sfence
    %v92 = vld [vmem:[#allocation8] sm:$0xff]
    %v93 = vld [vmem:[#allocation8 + $0x8] sm:$0xff]
    %v94 = vld [vmem:[#allocation8 + $0x10] sm:$0xff]
    %v95 = vld [vmem:[#allocation8 + $0x18] sm:$0xff]
    %v96 = vld [vmem:[#allocation8 + $0x20] sm:$0xff]
    %v97 = vld [vmem:[#allocation8 + $0x28] sm:$0xff]
    %v98 = vld [vmem:[#allocation8 + $0x30] sm:$0xff]
    %v99 = vld [vmem:[#allocation8 + $0x38] sm:$0xff]
    %v100 = vld [vmem:[#allocation8 + $0x40] sm:$0xff]
    %v101 = vld [vmem:[#allocation8 + $0x48] sm:$0xff]
    %v102 = vld [vmem:[#allocation8 + $0x50] sm:$0xff]
    %v103 = vld [vmem:[#allocation8 + $0x58] sm:$0xff]
    %v104 = vld [vmem:[#allocation8 + $0x60] sm:$0xff]
    %v105 = vld [vmem:[#allocation8 + $0x68] sm:$0xff]
    %v106 = vld [vmem:[#allocation8 + $0x70] sm:$0xff]
    %v107 = vld [vmem:[#allocation8 + $0x78] sm:$0xff]
    %v108 = vld [vmem:[#allocation8 + $0x80] sm:$0xff]
    %v109 = vld [vmem:[#allocation8 + $0x88] sm:$0xff]
    %v110 = vld [vmem:[#allocation8 + $0x90] sm:$0xff]
    %v111 = vld [vmem:[#allocation8 + $0x98] sm:$0xff]
    %v112 = vld [vmem:[#allocation8 + $0xa0] sm:$0xff]
    %v113 = vld [vmem:[#allocation8 + $0xa8] sm:$0xff]
    %v114 = vld [vmem:[#allocation8 + $0xb0] sm:$0xff]
    %v115 = vld [vmem:[#allocation8 + $0xb8] sm:$0xff]
    %v116 = vld [vmem:[#allocation8 + $0xc0] sm:$0xff]
    %v117 = vld [vmem:[#allocation8 + $0xc8] sm:$0xff]
    %v118 = vld [vmem:[#allocation8 + $0xd0] sm:$0xff]
    %v119 = vld [vmem:[#allocation8 + $0xd8] sm:$0xff]
    %v120 = vld [vmem:[#allocation8 + $0xe0] sm:$0xff]
    %v121 = vld [vmem:[#allocation8 + $0xe8] sm:$0xff]
    %v122 = vld [vmem:[#allocation8 + $0xf0] sm:$0xff]
    %v123 = vld [vmem:[#allocation8 + $0xf8] sm:$0xff]
    %v124 = vld [vmem:[#allocation8 + $0x100] sm:$0xff]
    %v125 = vld [vmem:[#allocation8 + $0x108] sm:$0xff]
    %v126 = vld [vmem:[#allocation8 + $0x110] sm:$0xff]
    %v127 = vld [vmem:[#allocation8 + $0x118] sm:$0xff]
    %v128 = vld [vmem:[#allocation8 + $0x120] sm:$0xff]
    %v129 = vld [vmem:[#allocation8 + $0x128] sm:$0xff]
    %v130 = vld [vmem:[#allocation8 + $0x130] sm:$0xff]
    %v131 = vld [vmem:[#allocation8 + $0x138] sm:$0xff]
    %v132 = vld [vmem:[#allocation8 + $0x140] sm:$0xff]
    %v133 = vld [vmem:[#allocation8 + $0x148] sm:$0xff]
    %v134 = vld [vmem:[#allocation8 + $0x150] sm:$0xff]
    %v135 = vld [vmem:[#allocation8 + $0x158] sm:$0xff]
    %v136 = vld [vmem:[#allocation8 + $0x160] sm:$0xff]
    %v137 = vld [vmem:[#allocation8 + $0x168] sm:$0xff]
    %v138 = vld [vmem:[#allocation8 + $0x170] sm:$0xff]
    %v139 = vld [vmem:[#allocation8 + $0x178] sm:$0xff]
    %v140 = vld [vmem:[#allocation8 + $0x180] sm:$0xff]
    %v141 = vld [vmem:[#allocation8 + $0x188] sm:$0xff]
    %v142 = vld [vmem:[#allocation8 + $0x190] sm:$0xff]
    %v143 = vld [vmem:[#allocation8 + $0x198] sm:$0xff]
    %v144 = vld [vmem:[#allocation8 + $0x1a0] sm:$0xff]
    %v145 = vld [vmem:[#allocation8 + $0x1a8] sm:$0xff]
    %v146 = vld [vmem:[#allocation8 + $0x1b0] sm:$0xff]
    %v147 = vld [vmem:[#allocation8 + $0x1b8] sm:$0xff]
    %v148 = vld [vmem:[#allocation8 + $0x1c0] sm:$0xff]
    %v149 = vld [vmem:[#allocation8 + $0x1c8] sm:$0xff]
    %v150 = vld [vmem:[#allocation8 + $0x1d0] sm:$0xff]
    %v151 = vld [vmem:[#allocation8 + $0x1d8] sm:$0xff]
    %v152 = vld [vmem:[#allocation8 + $0x1e0] sm:$0xff]
    %v153 = vld [vmem:[#allocation8 + $0x1e8] sm:$0xff]
    %v154 = vld [vmem:[#allocation8 + $0x1f0] sm:$0xff]
    %v155 = vld [vmem:[#allocation8 + $0x1f8] sm:$0xff]
    %v156 = vld [vmem:[#allocation4] sm:$0xff]
    %v157 = vld [vmem:[#allocation4 + $0x8] sm:$0xff]
    %v158 = vld [vmem:[#allocation4 + $0x10] sm:$0xff]
    %v159 = vld [vmem:[#allocation4 + $0x18] sm:$0xff]
    %v160 = vld [vmem:[#allocation4 + $0x20] sm:$0xff]
    %v161 = vld [vmem:[#allocation4 + $0x28] sm:$0xff]
    %v162 = vld [vmem:[#allocation4 + $0x30] sm:$0xff]
    %v163 = vld [vmem:[#allocation4 + $0x38] sm:$0xff]
    %v164 = vld [vmem:[#allocation4 + $0x40] sm:$0xff]
    %v165 = vld [vmem:[#allocation4 + $0x48] sm:$0xff]
    %v166 = vld [vmem:[#allocation4 + $0x50] sm:$0xff]
    %v167 = vld [vmem:[#allocation4 + $0x58] sm:$0xff]
    %v168 = vld [vmem:[#allocation4 + $0x60] sm:$0xff]
    %v169 = vld [vmem:[#allocation4 + $0x68] sm:$0xff]
    %v170 = vld [vmem:[#allocation4 + $0x70] sm:$0xff]
    %v171 = vld [vmem:[#allocation4 + $0x78] sm:$0xff]
    %v172 = vld [vmem:[#allocation4 + $0x80] sm:$0xff]
    %v173 = vld [vmem:[#allocation4 + $0x88] sm:$0xff]
    %v174 = vld [vmem:[#allocation4 + $0x90] sm:$0xff]
    %v175 = vld [vmem:[#allocation4 + $0x98] sm:$0xff]
    %v176 = vld [vmem:[#allocation4 + $0xa0] sm:$0xff]
    %v177 = vld [vmem:[#allocation4 + $0xa8] sm:$0xff]
    %v178 = vld [vmem:[#allocation4 + $0xb0] sm:$0xff]
    %v179 = vld [vmem:[#allocation4 + $0xb8] sm:$0xff]
    %v180 = vld [vmem:[#allocation4 + $0xc0] sm:$0xff]
    %v181 = vld [vmem:[#allocation4 + $0xc8] sm:$0xff]
    %v182 = vld [vmem:[#allocation4 + $0xd0] sm:$0xff]
    %v183 = vld [vmem:[#allocation4 + $0xd8] sm:$0xff]
    %v184 = vld [vmem:[#allocation4 + $0xe0] sm:$0xff]
    %v185 = vld [vmem:[#allocation4 + $0xe8] sm:$0xff]
    %v186 = vld [vmem:[#allocation4 + $0xf0] sm:$0xff]
    %v187 = vld [vmem:[#allocation4 + $0xf8] sm:$0xff]
    %s188 = sld [smem:[#allocation13]]
    %v189 = vstv %s188
    %190 = vmatprep.subr.mxu0 0.0
    %191 = vmatpush1.msra.mxu0 %v156
    %192 = vmatprep.subr.mxu0 0.0
    %193 = vmatpush1.msra.mxu0 %v157
    %194 = vmatprep.subr.mxu0 0.0
    %195 = vmatpush1.msra.mxu0 %v158
    %196 = vmatprep.subr.mxu0 0.0
    %197 = vmatpush1.msra.mxu0 %v159
    %198 = vmatprep.subr.mxu0 0.0
    %199 = vmatpush1.msra.mxu0 %v160
    %200 = vmatprep.subr.mxu0 0.0
    %201 = vmatpush1.msra.mxu0 %v161
    %202 = vmatprep.subr.mxu0 0.0
    %203 = vmatpush1.msra.mxu0 %v162
    %204 = vmatprep.subr.mxu0 0.0
    %205 = vmatpush1.msra.mxu0 %v163
    %206 = vmatprep.subr.mxu0 0.0
    %207 = vmatpush1.msra.mxu0 %v164
    %208 = vmatprep.subr.mxu0 0.0
    %209 = vmatpush1.msra.mxu0 %v165
    %210 = vmatprep.subr.mxu0 0.0
    %211 = vmatpush1.msra.mxu0 %v166
    %212 = vmatprep.subr.mxu0 0.0
    %213 = vmatpush1.msra.mxu0 %v167
    %214 = vmatprep.subr.mxu0 0.0
    %215 = vmatpush1.msra.mxu0 %v168
    %216 = vmatprep.subr.mxu0 0.0
    %217 = vmatpush1.msra.mxu0 %v169
    %218 = vmatprep.subr.mxu0 0.0
    %219 = vmatpush1.msra.mxu0 %v170
    %220 = vmatprep.subr.mxu0 0.0
    %221 = vmatpush1.msra.mxu0 %v171
    %222 = vmatprep.subr.mxu0 0.0
    %223 = vmatpush1.msra.mxu0 %v172
    %224 = vmatprep.subr.mxu0 0.0
    %225 = vmatpush1.msra.mxu0 %v173
    %226 = vmatprep.subr.mxu0 0.0
    %227 = vmatpush1.msra.mxu0 %v174
    %228 = vmatprep.subr.mxu0 0.0
    %229 = vmatpush1.msra.mxu0 %v175
    %230 = vmatprep.subr.mxu0 0.0
    %231 = vmatpush1.msra.mxu0 %v176
    %232 = vmatprep.subr.mxu0 0.0
    %233 = vmatpush1.msra.mxu0 %v177
    %234 = vmatprep.subr.mxu0 0.0
    %235 = vmatpush1.msra.mxu0 %v178
    %236 = vmatprep.subr.mxu0 0.0
    %237 = vmatpush1.msra.mxu0 %v179
    %238 = vmatprep.subr.mxu0 0.0
    %239 = vmatpush1.msra.mxu0 %v180
    %240 = vmatprep.subr.mxu0 0.0
    %241 = vmatpush1.msra.mxu0 %v181
    %242 = vmatprep.subr.mxu0 0.0
    %243 = vmatpush1.msra.mxu0 %v182
    %244 = vmatprep.subr.mxu0 0.0
    %245 = vmatpush1.msra.mxu0 %v183
    %246 = vmatprep.subr.mxu0 0.0
    %247 = vmatpush1.msra.mxu0 %v184
    %248 = vmatprep.subr.mxu0 0.0
    %249 = vmatpush1.msra.mxu0 %v185
    %250 = vmatprep.subr.mxu0 0.0
    %251 = vmatpush1.msra.mxu0 %v186
    %252 = vmatprep.subr.mxu0 0.0
    %253 = vmatpush1.msra.mxu0 %v187
    %254 = vmatprep.mubr.f32.mxu0 %v93
    %255 = vmatmul.mubr.f32.gmra.mrb[0].mxu0 %v92
    %v256 = vpop.f32.mrb[0].mxu0
    %v257 = vadd.f32 %v189, %v256
    %v258 = vpop.f32.mrb[0].mxu0
    %259 = vmatprep.mubr.f32.mxu0 %v95
    %260 = vmatmul.mubr.f32.gmra.mrb[0].mxu0 %v94
    %v261 = vpop.f32.mrb[0].mxu0
    %v262 = vadd.f32 %v189, %v261
    %v263 = vpop.f32.mrb[0].mxu0
    %264 = vmatprep.mubr.f32.mxu0 %v97
    %265 = vmatmul.mubr.f32.gmra.mrb[0].mxu0 %v96
    %v266 = vpop.f32.mrb[0].mxu0
    %v267 = vadd.f32 %v189, %v266
    %v268 = vpop.f32.mrb[0].mxu0
    %269 = vmatprep.mubr.f32.mxu0 %v99
    %270 = vmatmul.mubr.f32.gmra.mrb[0].mxu0 %v98
    %v271 = vpop.f32.mrb[0].mxu0
    %v272 = vadd.f32 %v189, %v271
    %v273 = vpop.f32.mrb[0].mxu0
    %274 = vmatprep.mubr.f32.mxu0 %v101
    %275 = vmatmul.mubr.f32.gmra.mrb[0].mxu0 %v100
    %v276 = vpop.f32.mrb[0].mxu0
    %v277 = vadd.f32 %v189, %v276
    %v278 = vpop.f32.mrb[0].mxu0
    %279 = vmatprep.mubr.f32.mxu0 %v103
    %280 = vmatmul.mubr.f32.gmra.mrb[0].mxu0 %v102
    %v281 = vpop.f32.mrb[0].mxu0
    %v282 = vadd.f32 %v189, %v281
    %v283 = vpop.f32.mrb[0].mxu0
    %284 = vmatprep.mubr.f32.mxu0 %v105
    %285 = vmatmul.mubr.f32.gmra.mrb[0].mxu0 %v104
    %v286 = vpop.f32.mrb[0].mxu0
    %v287 = vadd.f32 %v189, %v286
    %v288 = vpop.f32.mrb[0].mxu0
    %289 = vmatprep.mubr.f32.mxu0 %v107
    %290 = vmatmul.mubr.f32.gmra.mrb[0].mxu0 %v106
    %v291 = vpop.f32.mrb[0].mxu0
    %v292 = vadd.f32 %v189, %v291
    %v293 = vpop.f32.mrb[0].mxu0
    %294 = vmatprep.mubr.f32.mxu0 %v109
    %295 = vmatmul.mubr.f32.gmra.mrb[0].mxu0 %v108
    %v296 = vpop.f32.mrb[0].mxu0
    %v297 = vadd.f32 %v189, %v296
    %v298 = vpop.f32.mrb[0].mxu0
    %299 = vmatprep.mubr.f32.mxu0 %v111
    %300 = vmatmul.mubr.f32.gmra.mrb[0].mxu0 %v110
    %v301 = vpop.f32.mrb[0].mxu0
    %v302 = vadd.f32 %v189, %v301
    %v303 = vpop.f32.mrb[0].mxu0
    %304 = vmatprep.mubr.f32.mxu0 %v113
    %305 = vmatmul.mubr.f32.gmra.mrb[0].mxu0 %v112
    %v306 = vpop.f32.mrb[0].mxu0
    %v307 = vadd.f32 %v189, %v306
    %v308 = vpop.f32.mrb[0].mxu0
    %309 = vmatprep.mubr.f32.mxu0 %v115
    %310 = vmatmul.mubr.f32.gmra.mrb[0].mxu0 %v114
    %v311 = vpop.f32.mrb[0].mxu0
    %v312 = vadd.f32 %v189, %v311
    %v313 = vpop.f32.mrb[0].mxu0
    %314 = vmatprep.mubr.f32.mxu0 %v117
    %315 = vmatmul.mubr.f32.gmra.mrb[0].mxu0 %v116
    %v316 = vpop.f32.mrb[0].mxu0
    %v317 = vadd.f32 %v189, %v316
    %v318 = vpop.f32.mrb[0].mxu0
    %319 = vmatprep.mubr.f32.mxu0 %v119
    %320 = vmatmul.mubr.f32.gmra.mrb[0].mxu0 %v118
    %v321 = vpop.f32.mrb[0].mxu0
    %v322 = vadd.f32 %v189, %v321
    %v323 = vpop.f32.mrb[0].mxu0
    %324 = vmatprep.mubr.f32.mxu0 %v121
    %325 = vmatmul.mubr.f32.gmra.mrb[0].mxu0 %v120
    %v326 = vpop.f32.mrb[0].mxu0
    %v327 = vadd.f32 %v189, %v326
    %v328 = vpop.f32.mrb[0].mxu0
    %329 = vmatprep.mubr.f32.mxu0 %v123
    %330 = vmatmul.mubr.f32.gmra.mrb[0].mxu0 %v122
    %v331 = vpop.f32.mrb[0].mxu0
    %v332 = vadd.f32 %v189, %v331
    %v333 = vpop.f32.mrb[0].mxu0
    %334 = vmatprep.mubr.f32.mxu0 %v125
    %335 = vmatmul.mubr.f32.gmra.mrb[0].mxu0 %v124
    %v336 = vpop.f32.mrb[0].mxu0
    %v337 = vadd.f32 %v189, %v336
    %v338 = vpop.f32.mrb[0].mxu0
    %339 = vmatprep.mubr.f32.mxu0 %v127
    %340 = vmatmul.mubr.f32.gmra.mrb[0].mxu0 %v126
    %v341 = vpop.f32.mrb[0].mxu0
    %v342 = vadd.f32 %v189, %v341
    %v343 = vpop.f32.mrb[0].mxu0
    %344 = vmatprep.mubr.f32.mxu0 %v129
    %345 = vmatmul.mubr.f32.gmra.mrb[0].mxu0 %v128
    %v346 = vpop.f32.mrb[0].mxu0
    %v347 = vadd.f32 %v189, %v346
    %v348 = vpop.f32.mrb[0].mxu0
    %349 = vmatprep.mubr.f32.mxu0 %v131
    %350 = vmatmul.mubr.f32.gmra.mrb[0].mxu0 %v130
    %v351 = vpop.f32.mrb[0].mxu0
    %v352 = vadd.f32 %v189, %v351
    %v353 = vpop.f32.mrb[0].mxu0
    %354 = vmatprep.mubr.f32.mxu0 %v133
    %355 = vmatmul.mubr.f32.gmra.mrb[0].mxu0 %v132
    %v356 = vpop.f32.mrb[0].mxu0
    %v357 = vadd.f32 %v189, %v356
    %v358 = vpop.f32.mrb[0].mxu0
    %359 = vmatprep.mubr.f32.mxu0 %v135
    %360 = vmatmul.mubr.f32.gmra.mrb[0].mxu0 %v134
    %v361 = vpop.f32.mrb[0].mxu0
    %v362 = vadd.f32 %v189, %v361
    %v363 = vpop.f32.mrb[0].mxu0
    %364 = vmatprep.mubr.f32.mxu0 %v137
    %365 = vmatmul.mubr.f32.gmra.mrb[0].mxu0 %v136
    %v366 = vpop.f32.mrb[0].mxu0
    %v367 = vadd.f32 %v189, %v366
    %v368 = vpop.f32.mrb[0].mxu0
    %369 = vmatprep.mubr.f32.mxu0 %v139
    %370 = vmatmul.mubr.f32.gmra.mrb[0].mxu0 %v138
    %v371 = vpop.f32.mrb[0].mxu0
    %v372 = vadd.f32 %v189, %v371
    %v373 = vpop.f32.mrb[0].mxu0
    %374 = vmatprep.mubr.f32.mxu0 %v141
    %375 = vmatmul.mubr.f32.gmra.mrb[0].mxu0 %v140
    %v376 = vpop.f32.mrb[0].mxu0
    %v377 = vadd.f32 %v189, %v376
    %v378 = vpop.f32.mrb[0].mxu0
    %379 = vmatprep.mubr.f32.mxu0 %v143
    %380 = vmatmul.mubr.f32.gmra.mrb[0].mxu0 %v142
    %v381 = vpop.f32.mrb[0].mxu0
    %v382 = vadd.f32 %v189, %v381
    %v383 = vpop.f32.mrb[0].mxu0
    %384 = vmatprep.mubr.f32.mxu0 %v145
    %385 = vmatmul.mubr.f32.gmra.mrb[0].mxu0 %v144
    %v386 = vpop.f32.mrb[0].mxu0
    %v387 = vadd.f32 %v189, %v386
    %v388 = vpop.f32.mrb[0].mxu0
    %389 = vmatprep.mubr.f32.mxu0 %v147
    %390 = vmatmul.mubr.f32.gmra.mrb[0].mxu0 %v146
    %v391 = vpop.f32.mrb[0].mxu0
    %v392 = vadd.f32 %v189, %v391
    %v393 = vpop.f32.mrb[0].mxu0
    %394 = vmatprep.mubr.f32.mxu0 %v149
    %395 = vmatmul.mubr.f32.gmra.mrb[0].mxu0 %v148
    %v396 = vpop.f32.mrb[0].mxu0
    %v397 = vadd.f32 %v189, %v396
    %v398 = vpop.f32.mrb[0].mxu0
    %399 = vmatprep.mubr.f32.mxu0 %v151
    %400 = vmatmul.mubr.f32.gmra.mrb[0].mxu0 %v150
    %v401 = vpop.f32.mrb[0].mxu0
    %v402 = vadd.f32 %v189, %v401
    %v403 = vpop.f32.mrb[0].mxu0
    %404 = vmatprep.mubr.f32.mxu0 %v153
    %405 = vmatmul.mubr.f32.gmra.mrb[0].mxu0 %v152
    %v406 = vpop.f32.mrb[0].mxu0
    %v407 = vadd.f32 %v189, %v406
    %v408 = vpop.f32.mrb[0].mxu0
    %409 = vmatprep.mubr.f32.mxu0 %v155
    %410 = vmatmul.mubr.f32.gmra.mrb[0].mxu0 %v154
    %v411 = vpop.f32.mrb[0].mxu0
    %v412 = vadd.f32 %v189, %v411
    %v413 = vpop.f32.mrb[0].mxu0
    %414 = vdwg.mxu0
    %v415 = vmax.f32 %v257, 0.0
    %v416 = vmax.f32 %v262, 0.0
    %v417 = vmax.f32 %v267, 0.0
    %v418 = vmax.f32 %v272, 0.0
    %v419 = vmax.f32 %v277, 0.0
    %v420 = vmax.f32 %v282, 0.0
    %v421 = vmax.f32 %v287, 0.0
    %v422 = vmax.f32 %v292, 0.0
    %v423 = vmax.f32 %v297, 0.0
    %v424 = vmax.f32 %v302, 0.0
    %v425 = vmax.f32 %v307, 0.0
    %v426 = vmax.f32 %v312, 0.0
    %v427 = vmax.f32 %v317, 0.0
    %v428 = vmax.f32 %v322, 0.0
    %v429 = vmax.f32 %v327, 0.0
    %v430 = vmax.f32 %v332, 0.0
    %v431 = vmax.f32 %v337, 0.0
    %v432 = vmax.f32 %v342, 0.0
    %v433 = vmax.f32 %v347, 0.0
    %v434 = vmax.f32 %v352, 0.0
    %v435 = vmax.f32 %v357, 0.0
    %v436 = vmax.f32 %v362, 0.0
    %v437 = vmax.f32 %v367, 0.0
    %v438 = vmax.f32 %v372, 0.0
    %v439 = vmax.f32 %v377, 0.0
    %v440 = vmax.f32 %v382, 0.0
    %v441 = vmax.f32 %v387, 0.0
    %v442 = vmax.f32 %v392, 0.0
    %v443 = vmax.f32 %v397, 0.0
    %v444 = vmax.f32 %v402, 0.0
    %v445 = vmax.f32 %v407, 0.0
    %v446 = vmax.f32 %v412, 0.0
    %447 = vst [vmem:[#allocation2] sm:$0xff] %v415
    %448 = vst [vmem:[#allocation2 + $0x8] sm:$0xff] %v416
    %449 = vst [vmem:[#allocation2 + $0x10] sm:$0xff] %v417
    %450 = vst [vmem:[#allocation2 + $0x18] sm:$0xff] %v418
    %451 = vst [vmem:[#allocation2 + $0x20] sm:$0xff] %v419
    %452 = vst [vmem:[#allocation2 + $0x28] sm:$0xff] %v420
    %453 = vst [vmem:[#allocation2 + $0x30] sm:$0xff] %v421
    %454 = vst [vmem:[#allocation2 + $0x38] sm:$0xff] %v422
    %455 = vst [vmem:[#allocation2 + $0x40] sm:$0xff] %v423
    %456 = vst [vmem:[#allocation2 + $0x48] sm:$0xff] %v424
    %457 = vst [vmem:[#allocation2 + $0x50] sm:$0xff] %v425
    %458 = vst [vmem:[#allocation2 + $0x58] sm:$0xff] %v426
    %459 = vst [vmem:[#allocation2 + $0x60] sm:$0xff] %v427
    %460 = vst [vmem:[#allocation2 + $0x68] sm:$0xff] %v428
    %461 = vst [vmem:[#allocation2 + $0x70] sm:$0xff] %v429
    %462 = vst [vmem:[#allocation2 + $0x78] sm:$0xff] %v430
    %463 = vst [vmem:[#allocation2 + $0x80] sm:$0xff] %v431
    %464 = vst [vmem:[#allocation2 + $0x88] sm:$0xff] %v432
    %465 = vst [vmem:[#allocation2 + $0x90] sm:$0xff] %v433
    %466 = vst [vmem:[#allocation2 + $0x98] sm:$0xff] %v434
    %467 = vst [vmem:[#allocation2 + $0xa0] sm:$0xff] %v435
    %468 = vst [vmem:[#allocation2 + $0xa8] sm:$0xff] %v436
    %469 = vst [vmem:[#allocation2 + $0xb0] sm:$0xff] %v437
    %470 = vst [vmem:[#allocation2 + $0xb8] sm:$0xff] %v438
    %471 = vst [vmem:[#allocation2 + $0xc0] sm:$0xff] %v439
    %472 = vst [vmem:[#allocation2 + $0xc8] sm:$0xff] %v440
    %473 = vst [vmem:[#allocation2 + $0xd0] sm:$0xff] %v441
    %474 = vst [vmem:[#allocation2 + $0xd8] sm:$0xff] %v442
    %475 = vst [vmem:[#allocation2 + $0xe0] sm:$0xff] %v443
    %476 = vst [vmem:[#allocation2 + $0xe8] sm:$0xff] %v444
    %477 = vst [vmem:[#allocation2 + $0xf0] sm:$0xff] %v445
    %478 = vst [vmem:[#allocation2 + $0xf8] sm:$0xff] %v446
    %v479 = vld [vmem:[#allocation10] sm:$0xff]
    %v480 = vld [vmem:[#allocation10 + $0x8] sm:$0xff]
    %v481 = vld [vmem:[#allocation10 + $0x10] sm:$0xff]
    %v482 = vld [vmem:[#allocation10 + $0x18] sm:$0xff]
    %v483 = vld [vmem:[#allocation10 + $0x20] sm:$0xff]
    %v484 = vld [vmem:[#allocation10 + $0x28] sm:$0xff]
    %v485 = vld [vmem:[#allocation10 + $0x30] sm:$0xff]
    %v486 = vld [vmem:[#allocation10 + $0x38] sm:$0xff]
    %v487 = vld [vmem:[#allocation10 + $0x40] sm:$0xff]
    %v488 = vld [vmem:[#allocation10 + $0x48] sm:$0xff]
    %v489 = vld [vmem:[#allocation10 + $0x50] sm:$0xff]
    %v490 = vld [vmem:[#allocation10 + $0x58] sm:$0xff]
    %v491 = vld [vmem:[#allocation10 + $0x60] sm:$0xff]
    %v492 = vld [vmem:[#allocation10 + $0x68] sm:$0xff]
    %v493 = vld [vmem:[#allocation10 + $0x70] sm:$0xff]
    %v494 = vld [vmem:[#allocation10 + $0x78] sm:$0xff]
    %v495 = vld [vmem:[#allocation10 + $0x80] sm:$0xff]
    %v496 = vld [vmem:[#allocation10 + $0x88] sm:$0xff]
    %v497 = vld [vmem:[#allocation10 + $0x90] sm:$0xff]
    %v498 = vld [vmem:[#allocation10 + $0x98] sm:$0xff]
    %v499 = vld [vmem:[#allocation10 + $0xa0] sm:$0xff]
    %v500 = vld [vmem:[#allocation10 + $0xa8] sm:$0xff]
    %v501 = vld [vmem:[#allocation10 + $0xb0] sm:$0xff]
    %v502 = vld [vmem:[#allocation10 + $0xb8] sm:$0xff]
    %v503 = vld [vmem:[#allocation10 + $0xc0] sm:$0xff]
    %v504 = vld [vmem:[#allocation10 + $0xc8] sm:$0xff]
    %v505 = vld [vmem:[#allocation10 + $0xd0] sm:$0xff]
    %v506 = vld [vmem:[#allocation10 + $0xd8] sm:$0xff]
    %v507 = vld [vmem:[#allocation10 + $0xe0] sm:$0xff]
    %v508 = vld [vmem:[#allocation10 + $0xe8] sm:$0xff]
    %v509 = vld [vmem:[#allocation10 + $0xf0] sm:$0xff]
    %v510 = vld [vmem:[#allocation10 + $0xf8] sm:$0xff]
    %v511 = vld [vmem:[#allocation10 + $0x100] sm:$0xff]
    %v512 = vld [vmem:[#allocation10 + $0x108] sm:$0xff]
    %v513 = vld [vmem:[#allocation10 + $0x110] sm:$0xff]
    %v514 = vld [vmem:[#allocation10 + $0x118] sm:$0xff]
    %v515 = vld [vmem:[#allocation10 + $0x120] sm:$0xff]
    %v516 = vld [vmem:[#allocation10 + $0x128] sm:$0xff]
    %v517 = vld [vmem:[#allocation10 + $0x130] sm:$0xff]
    %v518 = vld [vmem:[#allocation10 + $0x138] sm:$0xff]
    %v519 = vld [vmem:[#allocation10 + $0x140] sm:$0xff]
    %v520 = vld [vmem:[#allocation10 + $0x148] sm:$0xff]
    %v521 = vld [vmem:[#allocation10 + $0x150] sm:$0xff]
    %v522 = vld [vmem:[#allocation10 + $0x158] sm:$0xff]
    %v523 = vld [vmem:[#allocation10 + $0x160] sm:$0xff]
    %v524 = vld [vmem:[#allocation10 + $0x168] sm:$0xff]
    %v525 = vld [vmem:[#allocation10 + $0x170] sm:$0xff]
    %v526 = vld [vmem:[#allocation10 + $0x178] sm:$0xff]
    %v527 = vld [vmem:[#allocation10 + $0x180] sm:$0xff]
    %v528 = vld [vmem:[#allocation10 + $0x188] sm:$0xff]
    %v529 = vld [vmem:[#allocation10 + $0x190] sm:$0xff]
    %v530 = vld [vmem:[#allocation10 + $0x198] sm:$0xff]
    %v531 = vld [vmem:[#allocation10 + $0x1a0] sm:$0xff]
    %v532 = vld [vmem:[#allocation10 + $0x1a8] sm:$0xff]
    %v533 = vld [vmem:[#allocation10 + $0x1b0] sm:$0xff]
    %v534 = vld [vmem:[#allocation10 + $0x1b8] sm:$0xff]
    %v535 = vld [vmem:[#allocation10 + $0x1c0] sm:$0xff]
    %v536 = vld [vmem:[#allocation10 + $0x1c8] sm:$0xff]
    %v537 = vld [vmem:[#allocation10 + $0x1d0] sm:$0xff]
    %v538 = vld [vmem:[#allocation10 + $0x1d8] sm:$0xff]
    %v539 = vld [vmem:[#allocation10 + $0x1e0] sm:$0xff]
    %v540 = vld [vmem:[#allocation10 + $0x1e8] sm:$0xff]
    %v541 = vld [vmem:[#allocation10 + $0x1f0] sm:$0xff]
    %v542 = vld [vmem:[#allocation10 + $0x1f8] sm:$0xff]
    %v543 = vld [vmem:[#allocation2] sm:$0xff]
    %v544 = vld [vmem:[#allocation2 + $0x8] sm:$0xff]
    %v545 = vld [vmem:[#allocation2 + $0x10] sm:$0xff]
    %v546 = vld [vmem:[#allocation2 + $0x18] sm:$0xff]
    %v547 = vld [vmem:[#allocation2 + $0x20] sm:$0xff]
    %v548 = vld [vmem:[#allocation2 + $0x28] sm:$0xff]
    %v549 = vld [vmem:[#allocation2 + $0x30] sm:$0xff]
    %v550 = vld [vmem:[#allocation2 + $0x38] sm:$0xff]
    %v551 = vld [vmem:[#allocation2 + $0x40] sm:$0xff]
    %v552 = vld [vmem:[#allocation2 + $0x48] sm:$0xff]
    %v553 = vld [vmem:[#allocation2 + $0x50] sm:$0xff]
    %v554 = vld [vmem:[#allocation2 + $0x58] sm:$0xff]
    %v555 = vld [vmem:[#allocation2 + $0x60] sm:$0xff]
    %v556 = vld [vmem:[#allocation2 + $0x68] sm:$0xff]
    %v557 = vld [vmem:[#allocation2 + $0x70] sm:$0xff]
    %v558 = vld [vmem:[#allocation2 + $0x78] sm:$0xff]
    %v559 = vld [vmem:[#allocation2 + $0x80] sm:$0xff]
    %v560 = vld [vmem:[#allocation2 + $0x88] sm:$0xff]
    %v561 = vld [vmem:[#allocation2 + $0x90] sm:$0xff]
    %v562 = vld [vmem:[#allocation2 + $0x98] sm:$0xff]
    %v563 = vld [vmem:[#allocation2 + $0xa0] sm:$0xff]
    %v564 = vld [vmem:[#allocation2 + $0xa8] sm:$0xff]
    %v565 = vld [vmem:[#allocation2 + $0xb0] sm:$0xff]
    %v566 = vld [vmem:[#allocation2 + $0xb8] sm:$0xff]
    %v567 = vld [vmem:[#allocation2 + $0xc0] sm:$0xff]
    %v568 = vld [vmem:[#allocation2 + $0xc8] sm:$0xff]
    %v569 = vld [vmem:[#allocation2 + $0xd0] sm:$0xff]
    %v570 = vld [vmem:[#allocation2 + $0xd8] sm:$0xff]
    %v571 = vld [vmem:[#allocation2 + $0xe0] sm:$0xff]
    %v572 = vld [vmem:[#allocation2 + $0xe8] sm:$0xff]
    %v573 = vld [vmem:[#allocation2 + $0xf0] sm:$0xff]
    %v574 = vld [vmem:[#allocation2 + $0xf8] sm:$0xff]
    %s575 = sld [smem:[#allocation13 + $0x1]]
    %v576 = vstv %s575
    %577 = vmatprep.subr.mxu0 0.0
    %578 = vmatpush1.msra.mxu0 %v543
    %579 = vmatprep.subr.mxu0 0.0
    %580 = vmatpush1.msra.mxu0 %v544
    %581 = vmatprep.subr.mxu0 0.0
    %582 = vmatpush1.msra.mxu0 %v545
    %583 = vmatprep.subr.mxu0 0.0
    %584 = vmatpush1.msra.mxu0 %v546
    %585 = vmatprep.subr.mxu0 0.0
    %586 = vmatpush1.msra.mxu0 %v547
    %587 = vmatprep.subr.mxu0 0.0
    %588 = vmatpush1.msra.mxu0 %v548
    %589 = vmatprep.subr.mxu0 0.0
    %590 = vmatpush1.msra.mxu0 %v549
    %591 = vmatprep.subr.mxu0 0.0
    %592 = vmatpush1.msra.mxu0 %v550
    %593 = vmatprep.subr.mxu0 0.0
    %594 = vmatpush1.msra.mxu0 %v551
    %595 = vmatprep.subr.mxu0 0.0
    %596 = vmatpush1.msra.mxu0 %v552
    %597 = vmatprep.subr.mxu0 0.0
    %598 = vmatpush1.msra.mxu0 %v553
    %599 = vmatprep.subr.mxu0 0.0
    %600 = vmatpush1.msra.mxu0 %v554
    %601 = vmatprep.subr.mxu0 0.0
    %602 = vmatpush1.msra.mxu0 %v555
    %603 = vmatprep.subr.mxu0 0.0
    %604 = vmatpush1.msra.mxu0 %v556
    %605 = vmatprep.subr.mxu0 0.0
    %606 = vmatpush1.msra.mxu0 %v557
    %607 = vmatprep.subr.mxu0 0.0
    %608 = vmatpush1.msra.mxu0 %v558
    %609 = vmatprep.subr.mxu0 0.0
    %610 = vmatpush1.msra.mxu0 %v559
    %611 = vmatprep.subr.mxu0 0.0
    %612 = vmatpush1.msra.mxu0 %v560
    %613 = vmatprep.subr.mxu0 0.0
    %614 = vmatpush1.msra.mxu0 %v561
    %615 = vmatprep.subr.mxu0 0.0
    %616 = vmatpush1.msra.mxu0 %v562
    %617 = vmatprep.subr.mxu0 0.0
    %618 = vmatpush1.msra.mxu0 %v563
    %619 = vmatprep.subr.mxu0 0.0
    %620 = vmatpush1.msra.mxu0 %v564
    %621 = vmatprep.subr.mxu0 0.0
    %622 = vmatpush1.msra.mxu0 %v565
    %623 = vmatprep.subr.mxu0 0.0
    %624 = vmatpush1.msra.mxu0 %v566
    %625 = vmatprep.subr.mxu0 0.0
    %626 = vmatpush1.msra.mxu0 %v567
    %627 = vmatprep.subr.mxu0 0.0
    %628 = vmatpush1.msra.mxu0 %v568
    %629 = vmatprep.subr.mxu0 0.0
    %630 = vmatpush1.msra.mxu0 %v569
    %631 = vmatprep.subr.mxu0 0.0
    %632 = vmatpush1.msra.mxu0 %v570
    %633 = vmatprep.subr.mxu0 0.0
    %634 = vmatpush1.msra.mxu0 %v571
    %635 = vmatprep.subr.mxu0 0.0
    %636 = vmatpush1.msra.mxu0 %v572
    %637 = vmatprep.subr.mxu0 0.0
    %638 = vmatpush1.msra.mxu0 %v573
    %639 = vmatprep.subr.mxu0 0.0
    %640 = vmatpush1.msra.mxu0 %v574
    %641 = vmatprep.mubr.f32.mxu0 %v480
    %642 = vmatmul.mubr.f32.gmra.mrb[0].mxu0 %v479
    %v643 = vpop.f32.mrb[0].mxu0
    %v644 = vadd.f32 %v576, %v643
    %v645 = vpop.f32.mrb[0].mxu0
    %646 = vmatprep.mubr.f32.mxu0 %v482
    %647 = vmatmul.mubr.f32.gmra.mrb[0].mxu0 %v481
    %v648 = vpop.f32.mrb[0].mxu0
    %v649 = vadd.f32 %v576, %v648
    %v650 = vpop.f32.mrb[0].mxu0
    %651 = vmatprep.mubr.f32.mxu0 %v484
    %652 = vmatmul.mubr.f32.gmra.mrb[0].mxu0 %v483
    %v653 = vpop.f32.mrb[0].mxu0
    %v654 = vadd.f32 %v576, %v653
    %v655 = vpop.f32.mrb[0].mxu0
    %656 = vmatprep.mubr.f32.mxu0 %v486
    %657 = vmatmul.mubr.f32.gmra.mrb[0].mxu0 %v485
    %v658 = vpop.f32.mrb[0].mxu0
    %v659 = vadd.f32 %v576, %v658
    %v660 = vpop.f32.mrb[0].mxu0
    %661 = vmatprep.mubr.f32.mxu0 %v488
    %662 = vmatmul.mubr.f32.gmra.mrb[0].mxu0 %v487
    %v663 = vpop.f32.mrb[0].mxu0
    %v664 = vadd.f32 %v576, %v663
    %v665 = vpop.f32.mrb[0].mxu0
    %666 = vmatprep.mubr.f32.mxu0 %v490
    %667 = vmatmul.mubr.f32.gmra.mrb[0].mxu0 %v489
    %v668 = vpop.f32.mrb[0].mxu0
    %v669 = vadd.f32 %v576, %v668
    %v670 = vpop.f32.mrb[0].mxu0
    %671 = vmatprep.mubr.f32.mxu0 %v492
    %672 = vmatmul.mubr.f32.gmra.mrb[0].mxu0 %v491
    %v673 = vpop.f32.mrb[0].mxu0
    %v674 = vadd.f32 %v576, %v673
    %v675 = vpop.f32.mrb[0].mxu0
    %676 = vmatprep.mubr.f32.mxu0 %v494
    %677 = vmatmul.mubr.f32.gmra.mrb[0].mxu0 %v493
    %v678 = vpop.f32.mrb[0].mxu0
    %v679 = vadd.f32 %v576, %v678
    %v680 = vpop.f32.mrb[0].mxu0
    %681 = vmatprep.mubr.f32.mxu0 %v496
    %682 = vmatmul.mubr.f32.gmra.mrb[0].mxu0 %v495
    %v683 = vpop.f32.mrb[0].mxu0
    %v684 = vadd.f32 %v576, %v683
    %v685 = vpop.f32.mrb[0].mxu0
    %686 = vmatprep.mubr.f32.mxu0 %v498
    %687 = vmatmul.mubr.f32.gmra.mrb[0].mxu0 %v497
    %v688 = vpop.f32.mrb[0].mxu0
    %v689 = vadd.f32 %v576, %v688
    %v690 = vpop.f32.mrb[0].mxu0
    %691 = vmatprep.mubr.f32.mxu0 %v500
    %692 = vmatmul.mubr.f32.gmra.mrb[0].mxu0 %v499
    %v693 = vpop.f32.mrb[0].mxu0
    %v694 = vadd.f32 %v576, %v693
    %v695 = vpop.f32.mrb[0].mxu0
    %696 = vmatprep.mubr.f32.mxu0 %v502
    %697 = vmatmul.mubr.f32.gmra.mrb[0].mxu0 %v501
    %v698 = vpop.f32.mrb[0].mxu0
    %v699 = vadd.f32 %v576, %v698
    %v700 = vpop.f32.mrb[0].mxu0
    %701 = vmatprep.mubr.f32.mxu0 %v504
    %702 = vmatmul.mubr.f32.gmra.mrb[0].mxu0 %v503
    %v703 = vpop.f32.mrb[0].mxu0
    %v704 = vadd.f32 %v576, %v703
    %v705 = vpop.f32.mrb[0].mxu0
    %706 = vmatprep.mubr.f32.mxu0 %v506
    %707 = vmatmul.mubr.f32.gmra.mrb[0].mxu0 %v505
    %v708 = vpop.f32.mrb[0].mxu0
    %v709 = vadd.f32 %v576, %v708
    %v710 = vpop.f32.mrb[0].mxu0
    %711 = vmatprep.mubr.f32.mxu0 %v508
    %712 = vmatmul.mubr.f32.gmra.mrb[0].mxu0 %v507
    %v713 = vpop.f32.mrb[0].mxu0
    %v714 = vadd.f32 %v576, %v713
    %v715 = vpop.f32.mrb[0].mxu0
    %716 = vmatprep.mubr.f32.mxu0 %v510
    %717 = vmatmul.mubr.f32.gmra.mrb[0].mxu0 %v509
    %v718 = vpop.f32.mrb[0].mxu0
    %v719 = vadd.f32 %v576, %v718
    %v720 = vpop.f32.mrb[0].mxu0
    %721 = vmatprep.mubr.f32.mxu0 %v512
    %722 = vmatmul.mubr.f32.gmra.mrb[0].mxu0 %v511
    %v723 = vpop.f32.mrb[0].mxu0
    %v724 = vadd.f32 %v576, %v723
    %v725 = vpop.f32.mrb[0].mxu0
    %726 = vmatprep.mubr.f32.mxu0 %v514
    %727 = vmatmul.mubr.f32.gmra.mrb[0].mxu0 %v513
    %v728 = vpop.f32.mrb[0].mxu0
    %v729 = vadd.f32 %v576, %v728
    %v730 = vpop.f32.mrb[0].mxu0
    %731 = vmatprep.mubr.f32.mxu0 %v516
    %732 = vmatmul.mubr.f32.gmra.mrb[0].mxu0 %v515
    %v733 = vpop.f32.mrb[0].mxu0
    %v734 = vadd.f32 %v576, %v733
    %v735 = vpop.f32.mrb[0].mxu0
    %736 = vmatprep.mubr.f32.mxu0 %v518
    %737 = vmatmul.mubr.f32.gmra.mrb[0].mxu0 %v517
    %v738 = vpop.f32.mrb[0].mxu0
    %v739 = vadd.f32 %v576, %v738
    %v740 = vpop.f32.mrb[0].mxu0
    %741 = vmatprep.mubr.f32.mxu0 %v520
    %742 = vmatmul.mubr.f32.gmra.mrb[0].mxu0 %v519
    %v743 = vpop.f32.mrb[0].mxu0
    %v744 = vadd.f32 %v576, %v743
    %v745 = vpop.f32.mrb[0].mxu0
    %746 = vmatprep.mubr.f32.mxu0 %v522
    %747 = vmatmul.mubr.f32.gmra.mrb[0].mxu0 %v521
    %v748 = vpop.f32.mrb[0].mxu0
    %v749 = vadd.f32 %v576, %v748
    %v750 = vpop.f32.mrb[0].mxu0
    %751 = vmatprep.mubr.f32.mxu0 %v524
    %752 = vmatmul.mubr.f32.gmra.mrb[0].mxu0 %v523
    %v753 = vpop.f32.mrb[0].mxu0
    %v754 = vadd.f32 %v576, %v753
    %v755 = vpop.f32.mrb[0].mxu0
    %756 = vmatprep.mubr.f32.mxu0 %v526
    %757 = vmatmul.mubr.f32.gmra.mrb[0].mxu0 %v525
    %v758 = vpop.f32.mrb[0].mxu0
    %v759 = vadd.f32 %v576, %v758
    %v760 = vpop.f32.mrb[0].mxu0
    %761 = vmatprep.mubr.f32.mxu0 %v528
    %762 = vmatmul.mubr.f32.gmra.mrb[0].mxu0 %v527
    %v763 = vpop.f32.mrb[0].mxu0
    %v764 = vadd.f32 %v576, %v763
    %v765 = vpop.f32.mrb[0].mxu0
    %766 = vmatprep.mubr.f32.mxu0 %v530
    %767 = vmatmul.mubr.f32.gmra.mrb[0].mxu0 %v529
    %v768 = vpop.f32.mrb[0].mxu0
    %v769 = vadd.f32 %v576, %v768
    %v770 = vpop.f32.mrb[0].mxu0
    %771 = vmatprep.mubr.f32.mxu0 %v532
    %772 = vmatmul.mubr.f32.gmra.mrb[0].mxu0 %v531
    %v773 = vpop.f32.mrb[0].mxu0
    %v774 = vadd.f32 %v576, %v773
    %v775 = vpop.f32.mrb[0].mxu0
    %776 = vmatprep.mubr.f32.mxu0 %v534
    %777 = vmatmul.mubr.f32.gmra.mrb[0].mxu0 %v533
    %v778 = vpop.f32.mrb[0].mxu0
    %v779 = vadd.f32 %v576, %v778
    %v780 = vpop.f32.mrb[0].mxu0
    %781 = vmatprep.mubr.f32.mxu0 %v536
    %782 = vmatmul.mubr.f32.gmra.mrb[0].mxu0 %v535
    %v783 = vpop.f32.mrb[0].mxu0
    %v784 = vadd.f32 %v576, %v783
    %v785 = vpop.f32.mrb[0].mxu0
    %786 = vmatprep.mubr.f32.mxu0 %v538
    %787 = vmatmul.mubr.f32.gmra.mrb[0].mxu0 %v537
    %v788 = vpop.f32.mrb[0].mxu0
    %v789 = vadd.f32 %v576, %v788
    %v790 = vpop.f32.mrb[0].mxu0
    %791 = vmatprep.mubr.f32.mxu0 %v540
    %792 = vmatmul.mubr.f32.gmra.mrb[0].mxu0 %v539
    %v793 = vpop.f32.mrb[0].mxu0
    %v794 = vadd.f32 %v576, %v793
    %v795 = vpop.f32.mrb[0].mxu0
    %796 = vmatprep.mubr.f32.mxu0 %v542
    %797 = vmatmul.mubr.f32.gmra.mrb[0].mxu0 %v541
    %v798 = vpop.f32.mrb[0].mxu0
    %v799 = vadd.f32 %v576, %v798
    %v800 = vpop.f32.mrb[0].mxu0
    %801 = vdwg.mxu0
    %v802 = vmax.f32 %v644, 0.0
    %v803 = vmax.f32 %v649, 0.0
    %v804 = vmax.f32 %v654, 0.0
    %v805 = vmax.f32 %v659, 0.0
    %v806 = vmax.f32 %v664, 0.0
    %v807 = vmax.f32 %v669, 0.0
    %v808 = vmax.f32 %v674, 0.0
    %v809 = vmax.f32 %v679, 0.0
    %v810 = vmax.f32 %v684, 0.0
    %v811 = vmax.f32 %v689, 0.0
    %v812 = vmax.f32 %v694, 0.0
    %v813 = vmax.f32 %v699, 0.0
    %v814 = vmax.f32 %v704, 0.0
    %v815 = vmax.f32 %v709, 0.0
    %v816 = vmax.f32 %v714, 0.0
    %v817 = vmax.f32 %v719, 0.0
    %v818 = vmax.f32 %v724, 0.0
    %v819 = vmax.f32 %v729, 0.0
    %v820 = vmax.f32 %v734, 0.0
    %v821 = vmax.f32 %v739, 0.0
    %v822 = vmax.f32 %v744, 0.0
    %v823 = vmax.f32 %v749, 0.0
    %v824 = vmax.f32 %v754, 0.0
    %v825 = vmax.f32 %v759, 0.0
    %v826 = vmax.f32 %v764, 0.0
    %v827 = vmax.f32 %v769, 0.0
    %v828 = vmax.f32 %v774, 0.0
    %v829 = vmax.f32 %v779, 0.0
    %v830 = vmax.f32 %v784, 0.0
    %v831 = vmax.f32 %v789, 0.0
    %v832 = vmax.f32 %v794, 0.0
    %v833 = vmax.f32 %v799, 0.0
    %834 = vst [vmem:[#allocation3] sm:$0xff] %v802
    %835 = vst [vmem:[#allocation3 + $0x8] sm:$0xff] %v803
    %836 = vst [vmem:[#allocation3 + $0x10] sm:$0xff] %v804
    %837 = vst [vmem:[#allocation3 + $0x18] sm:$0xff] %v805
    %838 = vst [vmem:[#allocation3 + $0x20] sm:$0xff] %v806
    %839 = vst [vmem:[#allocation3 + $0x28] sm:$0xff] %v807
    %840 = vst [vmem:[#allocation3 + $0x30] sm:$0xff] %v808
    %841 = vst [vmem:[#allocation3 + $0x38] sm:$0xff] %v809
    %842 = vst [vmem:[#allocation3 + $0x40] sm:$0xff] %v810
    %843 = vst [vmem:[#allocation3 + $0x48] sm:$0xff] %v811
    %844 = vst [vmem:[#allocation3 + $0x50] sm:$0xff] %v812
    %845 = vst [vmem:[#allocation3 + $0x58] sm:$0xff] %v813
    %846 = vst [vmem:[#allocation3 + $0x60] sm:$0xff] %v814
    %847 = vst [vmem:[#allocation3 + $0x68] sm:$0xff] %v815
    %848 = vst [vmem:[#allocation3 + $0x70] sm:$0xff] %v816
    %849 = vst [vmem:[#allocation3 + $0x78] sm:$0xff] %v817
    %850 = vst [vmem:[#allocation3 + $0x80] sm:$0xff] %v818
    %851 = vst [vmem:[#allocation3 + $0x88] sm:$0xff] %v819
    %852 = vst [vmem:[#allocation3 + $0x90] sm:$0xff] %v820
    %853 = vst [vmem:[#allocation3 + $0x98] sm:$0xff] %v821
    %854 = vst [vmem:[#allocation3 + $0xa0] sm:$0xff] %v822
    %855 = vst [vmem:[#allocation3 + $0xa8] sm:$0xff] %v823
    %856 = vst [vmem:[#allocation3 + $0xb0] sm:$0xff] %v824
    %857 = vst [vmem:[#allocation3 + $0xb8] sm:$0xff] %v825
    %858 = vst [vmem:[#allocation3 + $0xc0] sm:$0xff] %v826
    %859 = vst [vmem:[#allocation3 + $0xc8] sm:$0xff] %v827
    %860 = vst [vmem:[#allocation3 + $0xd0] sm:$0xff] %v828
    %861 = vst [vmem:[#allocation3 + $0xd8] sm:$0xff] %v829
    %862 = vst [vmem:[#allocation3 + $0xe0] sm:$0xff] %v830
    %863 = vst [vmem:[#allocation3 + $0xe8] sm:$0xff] %v831
    %864 = vst [vmem:[#allocation3 + $0xf0] sm:$0xff] %v832
    %865 = vst [vmem:[#allocation3 + $0xf8] sm:$0xff] %v833
    %v866 = vld [vmem:[#allocation11] sm:$0xff]
    %v867 = vld [vmem:[#allocation11 + $0x8] sm:$0xff]
    %v868 = vld [vmem:[#allocation11 + $0x10] sm:$0xff]
    %v869 = vld [vmem:[#allocation11 + $0x18] sm:$0xff]
    %v870 = vld [vmem:[#allocation11 + $0x20] sm:$0xff]
    %v871 = vld [vmem:[#allocation11 + $0x28] sm:$0xff]
    %v872 = vld [vmem:[#allocation11 + $0x30] sm:$0xff]
    %v873 = vld [vmem:[#allocation11 + $0x38] sm:$0xff]
    %v874 = vld [vmem:[#allocation11 + $0x40] sm:$0xff]
    %v875 = vld [vmem:[#allocation11 + $0x48] sm:$0xff]
    %v876 = vld [vmem:[#allocation11 + $0x50] sm:$0xff]
    %v877 = vld [vmem:[#allocation11 + $0x58] sm:$0xff]
    %v878 = vld [vmem:[#allocation11 + $0x60] sm:$0xff]
    %v879 = vld [vmem:[#allocation11 + $0x68] sm:$0xff]
    %v880 = vld [vmem:[#allocation3] sm:$0xff]
    %v881 = vld [vmem:[#allocation3 + $0x8] sm:$0xff]
    %v882 = vld [vmem:[#allocation3 + $0x10] sm:$0xff]
    %v883 = vld [vmem:[#allocation3 + $0x18] sm:$0xff]
    %v884 = vld [vmem:[#allocation3 + $0x20] sm:$0xff]
    %v885 = vld [vmem:[#allocation3 + $0x28] sm:$0xff]
    %v886 = vld [vmem:[#allocation3 + $0x30] sm:$0xff]
    %v887 = vld [vmem:[#allocation3 + $0x38] sm:$0xff]
    %v888 = vld [vmem:[#allocation3 + $0x40] sm:$0xff]
    %v889 = vld [vmem:[#allocation3 + $0x48] sm:$0xff]
    %v890 = vld [vmem:[#allocation3 + $0x50] sm:$0xff]
    %v891 = vld [vmem:[#allocation3 + $0x58] sm:$0xff]
    %v892 = vld [vmem:[#allocation3 + $0x60] sm:$0xff]
    %v893 = vld [vmem:[#allocation3 + $0x68] sm:$0xff]
    %v894 = vld [vmem:[#allocation3 + $0x70] sm:$0xff]
    %v895 = vld [vmem:[#allocation3 + $0x78] sm:$0xff]
    %v896 = vld [vmem:[#allocation3 + $0x80] sm:$0xff]
    %v897 = vld [vmem:[#allocation3 + $0x88] sm:$0xff]
    %v898 = vld [vmem:[#allocation3 + $0x90] sm:$0xff]
    %v899 = vld [vmem:[#allocation3 + $0x98] sm:$0xff]
    %v900 = vld [vmem:[#allocation3 + $0xa0] sm:$0xff]
    %v901 = vld [vmem:[#allocation3 + $0xa8] sm:$0xff]
    %v902 = vld [vmem:[#allocation3 + $0xb0] sm:$0xff]
    %v903 = vld [vmem:[#allocation3 + $0xb8] sm:$0xff]
    %v904 = vld [vmem:[#allocation3 + $0xc0] sm:$0xff]
    %v905 = vld [vmem:[#allocation3 + $0xc8] sm:$0xff]
    %v906 = vld [vmem:[#allocation3 + $0xd0] sm:$0xff]
    %v907 = vld [vmem:[#allocation3 + $0xd8] sm:$0xff]
    %v908 = vld [vmem:[#allocation3 + $0xe0] sm:$0xff]
    %v909 = vld [vmem:[#allocation3 + $0xe8] sm:$0xff]
    %v910 = vld [vmem:[#allocation3 + $0xf0] sm:$0xff]
    %v911 = vld [vmem:[#allocation3 + $0xf8] sm:$0xff]
    %s912 = sld [smem:[#allocation13 + $0x2]]
    %v913 = vstv %s912
    %914 = vmatprep.subr.mxu0 0.0
    %915 = vmatpush1.msra.mxu0 %v880
    %916 = vmatprep.subr.mxu0 0.0
    %917 = vmatpush1.msra.mxu0 %v881
    %918 = vmatprep.subr.mxu0 0.0
    %919 = vmatpush1.msra.mxu0 %v882
    %920 = vmatprep.subr.mxu0 0.0
    %921 = vmatpush1.msra.mxu0 %v883
    %922 = vmatprep.subr.mxu0 0.0
    %923 = vmatpush1.msra.mxu0 %v884
    %924 = vmatprep.subr.mxu0 0.0
    %925 = vmatpush1.msra.mxu0 %v885
    %926 = vmatprep.subr.mxu0 0.0
    %927 = vmatpush1.msra.mxu0 %v886
    %928 = vmatprep.subr.mxu0 0.0
    %929 = vmatpush1.msra.mxu0 %v887
    %930 = vmatprep.subr.mxu0 0.0
    %931 = vmatpush1.msra.mxu0 %v888
    %932 = vmatprep.subr.mxu0 0.0
    %933 = vmatpush1.msra.mxu0 %v889
    %934 = vmatprep.subr.mxu0 0.0
    %935 = vmatpush1.msra.mxu0 %v890
    %936 = vmatprep.subr.mxu0 0.0
    %937 = vmatpush1.msra.mxu0 %v891
    %938 = vmatprep.subr.mxu0 0.0
    %939 = vmatpush1.msra.mxu0 %v892
    %940 = vmatprep.subr.mxu0 0.0
    %941 = vmatpush1.msra.mxu0 %v893
    %942 = vmatprep.subr.mxu0 0.0
    %943 = vmatpush1.msra.mxu0 %v894
    %944 = vmatprep.subr.mxu0 0.0
    %945 = vmatpush1.msra.mxu0 %v895
    %946 = vmatprep.subr.mxu0 0.0
    %947 = vmatpush1.msra.mxu0 %v896
    %948 = vmatprep.subr.mxu0 0.0
    %949 = vmatpush1.msra.mxu0 %v897
    %950 = vmatprep.subr.mxu0 0.0
    %951 = vmatpush1.msra.mxu0 %v898
    %952 = vmatprep.subr.mxu0 0.0
    %953 = vmatpush1.msra.mxu0 %v899
    %954 = vmatprep.subr.mxu0 0.0
    %955 = vmatpush1.msra.mxu0 %v900
    %956 = vmatprep.subr.mxu0 0.0
    %957 = vmatpush1.msra.mxu0 %v901
    %958 = vmatprep.subr.mxu0 0.0
    %959 = vmatpush1.msra.mxu0 %v902
    %960 = vmatprep.subr.mxu0 0.0
    %961 = vmatpush1.msra.mxu0 %v903
    %962 = vmatprep.subr.mxu0 0.0
    %963 = vmatpush1.msra.mxu0 %v904
    %964 = vmatprep.subr.mxu0 0.0
    %965 = vmatpush1.msra.mxu0 %v905
    %966 = vmatprep.subr.mxu0 0.0
    %967 = vmatpush1.msra.mxu0 %v906
    %968 = vmatprep.subr.mxu0 0.0
    %969 = vmatpush1.msra.mxu0 %v907
    %970 = vmatprep.subr.mxu0 0.0
    %971 = vmatpush1.msra.mxu0 %v908
    %972 = vmatprep.subr.mxu0 0.0
    %973 = vmatpush1.msra.mxu0 %v909
    %974 = vmatprep.subr.mxu0 0.0
    %975 = vmatpush1.msra.mxu0 %v910
    %976 = vmatprep.subr.mxu0 0.0
    %977 = vmatpush1.msra.mxu0 %v911
    %978 = vmatprep.mubr.f32.mxu0 %v867
    %979 = vmatmul.mubr.f32.gmra.mrb[0].mxu0 %v866
    %v980 = vpop.f32.mrb[0].mxu0
    %v981 = vadd.f32 %v913, %v980
    %v982 = vpop.f32.mrb[0].mxu0
    %983 = vmatprep.mubr.f32.mxu0 %v869
    %984 = vmatmul.mubr.f32.gmra.mrb[0].mxu0 %v868
    %v985 = vpop.f32.mrb[0].mxu0
    %v986 = vadd.f32 %v913, %v985
    %v987 = vpop.f32.mrb[0].mxu0
    %988 = vmatprep.mubr.f32.mxu0 %v871
    %989 = vmatmul.mubr.f32.gmra.mrb[0].mxu0 %v870
    %v990 = vpop.f32.mrb[0].mxu0
    %v991 = vadd.f32 %v913, %v990
    %v992 = vpop.f32.mrb[0].mxu0
    %993 = vmatprep.mubr.f32.mxu0 %v873
    %994 = vmatmul.mubr.f32.gmra.mrb[0].mxu0 %v872
    %v995 = vpop.f32.mrb[0].mxu0
    %v996 = vadd.f32 %v913, %v995
    %v997 = vpop.f32.mrb[0].mxu0
    %998 = vmatprep.mubr.f32.mxu0 %v875
    %999 = vmatmul.mubr.f32.gmra.mrb[0].mxu0 %v874
    %v1000 = vpop.f32.mrb[0].mxu0
    %v1001 = vadd.f32 %v913, %v1000
    %v1002 = vpop.f32.mrb[0].mxu0
    %1003 = vmatprep.mubr.f32.mxu0 %v877
    %1004 = vmatmul.mubr.f32.gmra.mrb[0].mxu0 %v876
    %v1005 = vpop.f32.mrb[0].mxu0
    %v1006 = vadd.f32 %v913, %v1005
    %v1007 = vpop.f32.mrb[0].mxu0
    %1008 = vmatprep.mubr.f32.mxu0 %v879
    %1009 = vmatmul.mubr.f32.gmra.mrb[0].mxu0 %v878
    %v1010 = vpop.f32.mrb[0].mxu0
    %v1011 = vadd.f32 %v913, %v1010
    %v1012 = vpop.f32.mrb[0].mxu0
    %1013 = vdwg.mxu0
    %1014 = vst [vmem:[#allocation15] sm:$0xff] %v981
    %1015 = vst [vmem:[#allocation15 + $0x8] sm:$0xff] %v986
    %1016 = vst [vmem:[#allocation15 + $0x10] sm:$0xff] %v991
    %1017 = vst [vmem:[#allocation15 + $0x18] sm:$0xff] %v996
    %1018 = vst [vmem:[#allocation15 + $0x20] sm:$0xff] %v1001
    %1019 = vst [vmem:[#allocation15 + $0x28] sm:$0xff] %v1006
    %1020 = vst [vmem:[#allocation15 + $0x30] sm:$0xff] %v1011
    %v1021 = vmax.f32 %v981, 0.0
    %v1022 = vmax.f32 %v986, 0.0
    %v1023 = vmax.f32 %v991, 0.0
    %v1024 = vmax.f32 %v996, 0.0
    %v1025 = vmax.f32 %v1001, 0.0
    %v1026 = vmax.f32 %v1006, 0.0
    %v1027 = vmax.f32 %v1011, 0.0
    %1028 = vst [vmem:[#allocation14] sm:$0xff] %v1021
    %1029 = vst [vmem:[#allocation14 + $0x8] sm:$0xff] %v1022
    %1030 = vst [vmem:[#allocation14 + $0x10] sm:$0xff] %v1023
    %1031 = vst [vmem:[#allocation14 + $0x18] sm:$0xff] %v1024
    %1032 = vst [vmem:[#allocation14 + $0x20] sm:$0xff] %v1025
    %1033 = vst [vmem:[#allocation14 + $0x28] sm:$0xff] %v1026
    %1034 = vst [vmem:[#allocation14 + $0x30] sm:$0xff] %v1027
    // Predicated region
    $region42: #{tpu_custom_call.1} parent=1 // pred_check
      _
    $region43: #{tpu_custom_call.1} parent=1 // pred_check_branch
      %1036 = sbr.rel (0) target = $region45
    $region44: #{tpu_custom_call.1} parent=1 // pred_region
      %s1038 = ssub.s32 896, 896
      %1039 = vsyncadd [#allocation6], %s1038
      %s1040 = sshll.u32 [#allocation14], 4
      %s1041 = int_to_ptr.vmem [resolvable:$true] %s1040
      %1046 = dma.vmem_to_hbm [thread:$0]  %s1041, 896, %s5, [#allocation6], 128, 128, 8
    $region45: #{tpu_custom_call.1} parent=1 // pred_fallthru
      _
    // Predicated region
    $region46: #{tpu_custom_call.1} parent=1 // pred_check
      _
    $region47: #{tpu_custom_call.1} parent=1 // pred_check_branch
      %1048 = sbr.rel (0) target = $region49
    $region48: #{tpu_custom_call.1} parent=1 // pred_region
      %s1050 = ssub.s32 896, 896
      %1051 = vsyncadd [#allocation16], %s1050
      %s1052 = sshll.u32 [#allocation15], 4
      %s1053 = int_to_ptr.vmem [resolvable:$true] %s1052
      %1058 = dma.vmem_to_hbm [thread:$0]  %s1053, 896, %s6, [#allocation16], 128, 128, 8
    $region49: #{tpu_custom_call.1} parent=1 // pred_fallthru
      _
    // Predicated region
    $region50: #{tpu_custom_call.1} parent=1 // pred_check
      _
    $region51: #{tpu_custom_call.1} parent=1 // pred_check_branch
      %1060 = sbr.rel (0) target = $region53
    $region52: #{tpu_custom_call.1} parent=1 // pred_region
      %1061 = dma.done [#allocation6], 896
    $region53: #{tpu_custom_call.1} parent=1 // pred_fallthru
      _
    // Predicated region
    $region54: #{tpu_custom_call.1} parent=1 // pred_check
      _
    $region55: #{tpu_custom_call.1} parent=1 // pred_check_branch
      %1063 = sbr.rel (0) target = $region57
    $region56: #{tpu_custom_call.1} parent=1 // pred_region
      %1064 = dma.done [#allocation16], 896
    $region57: #{tpu_custom_call.1} parent=1 // pred_fallthru
      _
    %1065 = vsyncpa [#allocation5], 1
    %1066 = vsyncpa [#allocation9], 1
    %1067 = vsyncpa [#allocation12], 1
    %1068 = vsyncpa [#allocation6], 1
    %1069 = vsyncpa [#allocation16], 1
    %1070 = vsyncpa [#allocation7], 1

</llo_original>
